<compile_context>
chip_gen: v5e
topology: v5e:2x2
jax: 0.10.0
libtpu: 0.0.40
codegen_flags: <defaults>
</compile_context>

<pallas_src>
import jax
import jax.numpy as jnp
from jax.experimental import pallas as pl
from jax.experimental.pallas import tpu as pltpu  # noqa: F401 (not needed: empty grid, default VMEM)


def _torch605_kernel(x_ref, o_ref):
    # x1/x2/x3/x4/x5 from the PyTorch forward are dead code w.r.t. the
    # returned value (forward returns x), so they are elided entirely.
    # The output block aliases the input HBM buffer, so this is the minimal
    # write needed to materialize the (aliased) output.
    o_ref[...] = x_ref[...]


@jax.jit
def torch605_forward(x):
    n, f = x.shape
    # Lane-dense layout: flatten so the long axis maps to the 128-wide lane
    # dimension (avoids masked vst.msk partial stores for narrow last dims).
    x_flat = x.reshape(1, n * f)
    blk = pl.BlockSpec((1, n * f), lambda: (0, 0))
    out_flat = pl.pallas_call(
        _torch605_kernel,
        out_shape=jax.ShapeDtypeStruct((1, n * f), x.dtype),
        in_specs=[blk],
        out_specs=blk,
        # Output aliases the input buffer: no fresh HBM allocation for the
        # identity result.
        input_output_aliases={0: 0},
        # Advisory cost hint: pure memory movement, no flops/transcendentals.
        cost_estimate=pl.CostEstimate(
            flops=0,
            transcendentals=0,
            bytes_accessed=2 * n * f * x.dtype.itemsize,
        ),
    )(x_flat)
    return out_flat.reshape(n, f)


if __name__ == "__main__":
    key = jax.random.PRNGKey(0)
    kx, kw, kb = jax.random.split(key, 3)

    # Small shape consistent with the module: feature dim 1 (Linear(1, 2)),
    # batch of 8 rows.
    x = jax.random.normal(kx, (8, 1), dtype=jnp.float32)

    # Deterministic init of the (unused) Linear(1, 2) parameters.
    linear_weight = jax.random.normal(kw, (2, 1), dtype=jnp.float32)  # unused in forward
    linear_bias = jax.random.normal(kb, (2,), dtype=jnp.float32)       # unused in forward

    y = torch605_forward(x)
    jax.block_until_ready(y)

    # forward(x) == x
    assert y.shape == x.shape
    assert jnp.allclose(y, x)
    print("KERNEL_OK")
</pallas_src>

<mosaic_0001>
module attributes {stable_mosaic.version = 11 : i64} {
  func.func @_torch605_kernel(%arg0: memref<1x8xf32, #tpu.memory_space<vmem>>, %arg1: memref<1x8xf32, #tpu.memory_space<vmem>>) attributes {dimension_semantics = [], scalar_prefetch = 0 : i64, scratch_operands = 0 : i64, tpu.core_type = #tpu.core_type<tc>} {
    %c0 = arith.constant 0 : index
    %c0_0 = arith.constant 0 : index
    %0 = vector.load %arg0[%c0, %c0_0] : memref<1x8xf32, #tpu.memory_space<vmem>>, vector<1x8xf32>
    %c0_1 = arith.constant 0 : index
    %c0_2 = arith.constant 0 : index
    %1 = vector.load %arg1[%c0_1, %c0_2] : memref<1x8xf32, #tpu.memory_space<vmem>>, vector<1x8xf32>
    tpu.vector_store %arg1[%c0_1, %c0_2], %0 {strides = array<i32>} : memref<1x8xf32, #tpu.memory_space<vmem>>, vector<1x8xf32>,
    return
  }
}

</mosaic_0001>

<llo_original>
// kernel: torch605_forward.1
$region0: #{torch605_forward.1}
  #allocation0 [shape = 'u32[]', space=smem, size = 0x4, offset = 0x4, fixed_abs, tag = 'smem constant byte address 0x4 - core index']
  #allocation1 [shape = 'u32[72,128]{1,0:T(1,128)}', space=vmem, size = 0x9000, scoped, tag = 'internal scratch']
  %s0 = inlined_call_operand.vmem [shape: f32[1,8], index: 0, kind: input, shape index: {}, may-alias: {0,1}]
  %s1 = inlined_call_operand.vmem [shape: f32[1,8], index: 1, kind: output, shape index: {}, may-alias: {0,1}]
  %s2 = sld [smem:[#allocation0]]
  $region14: #{torch605_forward.1} parent=0
    _
  %s4 = ssub.s32 1, %s2
  %s5 = scalar_select 0, %s4, %s2
  // Predicated region
  $region2: #{torch605_forward.1} parent=0 // pred_check
    _
  $region3: #{torch605_forward.1} parent=0 // pred_check_branch
    %7 = sbr.rel (0) target = $region5
  $region4: #{torch605_forward.1} parent=0 // pred_region
    _
  $region5: #{torch605_forward.1} parent=0 // pred_fallthru
    _
  %v8 = vld [vmem:[%s0] sm:$0x1]
  %vm9 = vcmask 57344
  %10 = vst.msk [vmem:[%s1] sm:$0x1] %vm9, %v8
  // Predicated region
  $region6: #{torch605_forward.1} parent=0 // pred_check
    _
  $region7: #{torch605_forward.1} parent=0 // pred_check_branch
    %12 = sbr.rel (0) target = $region9
  $region8: #{torch605_forward.1} parent=0 // pred_region
    _
  $region9: #{torch605_forward.1} parent=0 // pred_fallthru
    _
  // Predicated region
  $region10: #{torch605_forward.1} parent=0 // pred_check
    _
  $region11: #{torch605_forward.1} parent=0 // pred_check_branch
    %14 = sbr.rel (0) target = $region13
  $region12: #{torch605_forward.1} parent=0 // pred_region
    _
  $region13: #{torch605_forward.1} parent=0 // pred_fallthru
    _

</llo_original>
